<compile_context>
chip_gen: v6e
topology: v6e:2x2x1
jax: 0.10.0
libtpu: 0.0.40
codegen_flags: <defaults>
</compile_context>

<pallas_src>
import math

import jax
import jax.numpy as jnp
from jax.experimental import pallas as pl
from jax.experimental.pallas import tpu as pltpu

EPS = 1e-4

# Below this many input bytes XLA fusion beats pallas_call launch overhead.
_SMALL_INPUT_BYTES = 256 * 1024

# Target HBM bytes of x streamed per grid step (amortizes ~0.35 us/step).
_TARGET_X_BYTES_PER_TILE = 4 * 1024 * 1024


def _round_up(v, m):
    return ((v + m - 1) // m) * m


def _vmem_budget_and_limit():
    """Per-generation (pipelined-buffer budget, vmem_limit_bytes)."""
    try:
        cap = getattr(pltpu.get_tpu_info(), "vmem_capacity_bytes", None)
    except Exception:
        cap = None
    if cap is None:
        cap = 64 * 1024 * 1024  # assume the tightest part (v7x-sized)
    if cap >= 96 * 1024 * 1024:
        # v5e / v6e: 128 MiB physical VMEM -> larger tiles are free headroom.
        return 40 * 1024 * 1024, 64 * 1024 * 1024
    # v7x: 64 MiB physical and both TensorCores run concurrently under
    # "parallel", so keep the double-buffered footprint well under 32 MiB.
    return 24 * 1024 * 1024, 32 * 1024 * 1024


def _pick_tile_n(n_rows, m, x_itemsize, budget_bytes):
    """Row tile: big enough to amortize per-step overhead, small enough to fit
    the padded double-buffered VMEM footprint and to leave >= ~8 grid steps on
    large inputs (v7x megacore sharding)."""
    m_lanes = _round_up(m, 128)                       # x block pads M to 128 lanes
    w_fixed = 2 * _round_up(m, 8) * 128 * x_itemsize  # (M, 8) weight, 2 buffers, padded
    # Per row of tile: double-buffered x block + double-buffered (8, tile) f32 out block.
    per_row = 2 * m_lanes * x_itemsize + 2 * 8 * 4
    vmem_rows = max(128, (budget_bytes - w_fixed) // per_row)
    target_rows = max(128, _TARGET_X_BYTES_PER_TILE // max(1, m * x_itemsize))
    tile = min(vmem_rows, target_rows)
    if n_rows >= 8 * 1024:
        # Keep at least ~8 grid steps so the "parallel" axis can shard across
        # both TensorCores on v7x (v5e/v6e unaffected).
        tile = min(tile, max(1024, _round_up(pl.cdiv(n_rows, 8), 128)))
    tile = max(128, (tile // 128) * 128)              # lane-dense output blocks
    if tile >= n_rows:
        return n_rows                                 # single full-extent block
    return tile


def _soft_to_angle_kernel(x_ref, w_ref, out_ref):
    """(tile_n, M) @ (M, 8) on the MXU (f32 accumulate), stored lane-dense as
    an (8, tile_n) block (full 128-lane stores instead of masked 8-lane ones)."""
    sc = jnp.dot(x_ref[...], w_ref[...], preferred_element_type=jnp.float32)
    out_ref[...] = sc.T


def soft_to_angle_forward(x, phi_components, psi_components, omega_components,
                          *, use_pallas=None):
    """x: (B, L, M); *_components: (M, 1) float32 -> (B, L, 3) float32 angles."""
    B, L, M = x.shape
    N = B * L

    x2d = x.reshape(N, M)
    if x2d.dtype not in (jnp.bfloat16, jnp.float32):
        x2d = x2d.astype(jnp.float32)

    comps = jnp.concatenate(
        [phi_components, psi_components, omega_components], axis=1
    ).astype(jnp.float32)                                           # (M, 3)
    # Packed, sublane-aligned RHS: [sin(3) | cos(3) | 0 0]  -> (M, 8).
    w_packed = jnp.concatenate(
        [jnp.sin(comps), jnp.cos(comps), jnp.zeros((M, 2), jnp.float32)], axis=1
    ).astype(x2d.dtype)

    if use_pallas is None:
        use_pallas = N * M * x2d.dtype.itemsize >= _SMALL_INPUT_BYTES

    if use_pallas:
        budget, vmem_limit = _vmem_budget_and_limit()
        tile_n = _pick_tile_n(N, M, x2d.dtype.itemsize, budget)
        grid_n = pl.cdiv(N, tile_n)   # ragged last block handled by Pallas; no jnp.pad

        sc8 = pl.pallas_call(
            _soft_to_angle_kernel,
            out_shape=jax.ShapeDtypeStruct((8, N), jnp.float32),
            grid=(grid_n,),
            in_specs=[
                pl.BlockSpec((tile_n, M), lambda i: (i, 0)),
                pl.BlockSpec((M, 8), lambda i: (0, 0)),   # constant -> DMA'd once
            ],
            out_specs=pl.BlockSpec((8, tile_n), lambda i: (0, i)),
            compiler_params=pltpu.CompilerParams(
                dimension_semantics=("parallel",),
                vmem_limit_bytes=vmem_limit,
            ),
        )(x2d, w_packed)

        sin_part = sc8[:3]                     # rows: phi, psi, omega
        cos_part = sc8[3:6] + EPS
        # TODO(synk): arctan2 has no clean Mosaic TPU lowering; applied on the
        # tiny (3, N) result in plain JAX (negligible next to the matmul).
        angles = jnp.arctan2(sin_part, cos_part)          # (3, N)
        return angles.T.reshape(B, L, 3)

    # Small-input fallback: plain XLA is faster than a pallas_call launch.
    sc = x2d.astype(jnp.float32) @ w_packed.astype(jnp.float32)     # (N, 8)
    angles = jnp.arctan2(sc[:, :3], sc[:, 3:6] + EPS)
    return angles.reshape(B, L, 3)


def init_params(key, mixture_size):
    """Deterministic synthetic replacement for the file-based init in __init__."""
    k1, k2, k3, k4, k5 = jax.random.split(key, 5)
    n1 = int(mixture_size * 0.1)
    n2 = int(mixture_size * 0.9)
    omega1 = jax.random.uniform(k1, (n1,), minval=0.0, maxval=1.0)
    omega2 = jax.random.uniform(k2, (n2,), minval=2.0, maxval=math.pi)
    omega = jnp.concatenate([omega1, omega2])
    omega = jax.random.permutation(k3, omega).reshape(-1, 1).astype(jnp.float32)
    # phi / psi components come from a data file in the original module; here
    # they are synthesized as angles in [-pi, pi].
    phi = jax.random.uniform(
        k4, (mixture_size, 1), minval=-math.pi, maxval=math.pi
    ).astype(jnp.float32)
    psi = jax.random.uniform(
        k5, (mixture_size, 1), minval=-math.pi, maxval=math.pi
    ).astype(jnp.float32)
    return phi, psi, omega


if __name__ == "__main__":
    key = jax.random.PRNGKey(0)
    k_params, k_x = jax.random.split(key)

    batch, seq, mixture_size = 2, 8, 40  # int(40*0.1)+int(40*0.9) == 40
    phi_c, psi_c, omega_c = init_params(k_params, mixture_size)

    # Softmax-like mixture weights per (batch, seq) position.
    logits = jax.random.normal(k_x, (batch, seq, mixture_size), dtype=jnp.float32)
    x = jax.nn.softmax(logits, axis=-1)

    # Force the Pallas path even at demo size so the kernel is exercised.
    out = soft_to_angle_forward(x, phi_c, psi_c, omega_c, use_pallas=True)
    out = jax.block_until_ready(out)

    # Reference check in plain JAX (same math as the torch forward).
    x2d = x.reshape(-1, mixture_size)
    ref_phi = jnp.arctan2(x2d @ jnp.sin(phi_c), x2d @ jnp.cos(phi_c) + EPS)
    ref_psi = jnp.arctan2(x2d @ jnp.sin(psi_c), x2d @ jnp.cos(psi_c) + EPS)
    ref_omg = jnp.arctan2(x2d @ jnp.sin(omega_c), x2d @ jnp.cos(omega_c) + EPS)
    ref = jnp.concatenate([ref_phi, ref_psi, ref_omg], axis=1).reshape(batch, seq, 3)

    assert out.shape == (batch, seq, 3), out.shape
    assert jnp.allclose(out, ref, atol=1e-5), "mismatch vs reference"
    print("KERNEL_OK")
</pallas_src>

<mosaic_0001>
module attributes {stable_mosaic.version = 11 : i64} {
  func.func @_soft_to_angle_kernel(%arg0: i32, %arg1: memref<16x40xf32, #tpu.memory_space<vmem>>, %arg2: memref<40x8xf32, #tpu.memory_space<vmem>>, %arg3: memref<8x16xf32, #tpu.memory_space<vmem>>) attributes {dimension_semantics = [#tpu.dimension_semantics<parallel>], iteration_bounds = array<i64: 1>, scalar_prefetch = 0 : i64, scratch_operands = 0 : i64, tpu.core_type = #tpu.core_type<tc>, window_params = [{transform_indices = @transform_0, window_bounds = array<i64: 16, 40>}, {pipeline_mode = #tpu.pipeline_mode<synchronous>, transform_indices = @transform_1, window_bounds = array<i64: 40, 8>}, {transform_indices = @transform_2, window_bounds = array<i64: 8, 16>}]} {
    %c0 = arith.constant 0 : index
    %c0_0 = arith.constant 0 : index
    %0 = vector.load %arg1[%c0, %c0_0] : memref<16x40xf32, #tpu.memory_space<vmem>>, vector<16x40xf32>
    %c0_1 = arith.constant 0 : index
    %c0_2 = arith.constant 0 : index
    %1 = vector.load %arg2[%c0_1, %c0_2] : memref<40x8xf32, #tpu.memory_space<vmem>>, vector<40x8xf32>
    %cst = arith.constant dense<0.000000e+00> : vector<16x8xf32>
    %2 = tpu.matmul %0, %1, %cst {dimension_numbers = #tpu.dot_dimension_numbers<[1], [0], [0], [1], [0, 0, 1, 1], [], []>} : vector<16x40xf32>, vector<40x8xf32>, vector<16x8xf32> -> vector<16x8xf32>
    %3 = tpu.transpose %2, [1, 0] : vector<16x8xf32> -> vector<8x16xf32>
    %c0_3 = arith.constant 0 : index
    %c0_4 = arith.constant 0 : index
    %4 = vector.load %arg3[%c0_3, %c0_4] : memref<8x16xf32, #tpu.memory_space<vmem>>, vector<8x16xf32>
    tpu.vector_store %arg3[%c0_3, %c0_4], %3 {strides = array<i32>} : memref<8x16xf32, #tpu.memory_space<vmem>>, vector<8x16xf32>,
    return
  }
  func.func @transform_0(%arg0: i32) -> (i32, i32) {
    %c0_i32 = arith.constant 0 : i32
    %c0_i32_0 = arith.constant 0 : i32
    return %arg0, %c0_i32 : i32, i32
  }
  func.func @transform_1(%arg0: i32) -> (i32, i32) {
    %c0_i32 = arith.constant 0 : i32
    %c0_i32_0 = arith.constant 0 : i32
    %c0_i32_1 = arith.constant 0 : i32
    return %c0_i32, %c0_i32_0 : i32, i32
  }
  func.func @transform_2(%arg0: i32) -> (i32, i32) {
    %c0_i32 = arith.constant 0 : i32
    %c0_i32_0 = arith.constant 0 : i32
    return %c0_i32, %arg0 : i32, i32
  }
}

</mosaic_0001>

<llo_original>
// kernel: tpu_custom_call.1
$region0: #{tpu_custom_call.1}
  #allocation0 [shape = 'u32[]', space=smem, size = 0x4, offset = 0x4, fixed_abs, tag = 'smem constant byte address 0x4 - core index']
  #allocation1 [shape = 'u32[144,128]{1,0:T(1,128)}', space=vmem, size = 0x12000, scoped, tag = 'internal scratch']
  %s0 = inlined_call_operand.vmem [shape: f32[16,40], index: 0, kind: input, shape index: {}]
  %s1 = inlined_call_operand.vmem [shape: f32[40,8], index: 1, kind: input, shape index: {}]
  %s2 = inlined_call_operand.hbm [shape: f32[8,16], index: 2, kind: output, shape index: {}]
  %s3 = sld [smem:[#allocation0]]
  $region18: #{tpu_custom_call.1} parent=0
    _
  %s5 = ssub.s32 1, %s3
  %s6 = scalar_select 0, %s5, %s3
  $region1: #{tpu_custom_call.1} parent=0
    #allocation2 [shape = 'u8[4096]{0}', space=vmem, size = 0x1000, scoped, tag = 'output window, operand 0, single buffered']
    #allocation3 [shape = 's32[1]{0}', space=sflag, size = 0x4, scoped, tag = 'scoped memory for tpu_custom_call.1']
    %7 = vsyncpa [#allocation3], 0
    // Predicated region
    $region2: #{tpu_custom_call.1} parent=1 // pred_check
      _
    $region3: #{tpu_custom_call.1} parent=1 // pred_check_branch
      %9 = sbr.rel (0) target = $region5
    $region4: #{tpu_custom_call.1} parent=1 // pred_region
      _
    $region5: #{tpu_custom_call.1} parent=1 // pred_fallthru
      _
    // Predicated region
    $region6: #{tpu_custom_call.1} parent=1 // pred_check
      _
    $region7: #{tpu_custom_call.1} parent=1 // pred_check_branch
      %11 = sbr.rel (0) target = $region9
    $region8: #{tpu_custom_call.1} parent=1 // pred_region
      _
    $region9: #{tpu_custom_call.1} parent=1 // pred_fallthru
      _
    %v12 = vld [vmem:[%s0] sm:$0xff]
    %v13 = vld [vmem:[%s0 + $0x8] sm:$0xff]
    %v14 = vld [vmem:[%s1] sm:$0xff]
    %v15 = vld [vmem:[%s1 + $0x8] sm:$0xff]
    %v16 = vld [vmem:[%s1 + $0x10] sm:$0xff]
    %v17 = vld [vmem:[%s1 + $0x18] sm:$0xff]
    %v18 = vld [vmem:[%s1 + $0x20] sm:$0xff]
    %vm19 = vcmask 326656
    %v21 = vsel %vm19, %v12, 0
    %v24 = vsel %vm19, %v13, 0
    %26 = vmatprep.subr.mxu0 0.0
    %27 = vmatpush1.msra.mxu0 0.0
    %28 = vmatprep.subr.mxu0 0.0
    %29 = vmatpush1.msra.mxu0 0.0
    %30 = vmatprep.subr.mxu0 0.0
    %31 = vmatpush1.msra.mxu0 0.0
    %32 = vmatprep.subr.mxu0 0.0
    %33 = vmatpush1.msra.mxu0 0.0
    %34 = vmatprep.subr.mxu0 0.0
    %35 = vmatpush1.msra.mxu0 0.0
    %36 = vmatprep.subr.mxu0 0.0
    %37 = vmatpush1.msra.mxu0 0.0
    %38 = vmatprep.subr.mxu0 0.0
    %39 = vmatpush1.msra.mxu0 0.0
    %40 = vmatprep.subr.mxu0 0.0
    %41 = vmatpush1.msra.mxu0 0.0
    %42 = vmatprep.subr.mxu0 0.0
    %43 = vmatpush1.msra.mxu0 0.0
    %44 = vmatprep.subr.mxu0 0.0
    %45 = vmatpush1.msra.mxu0 0.0
    %46 = vmatprep.subr.mxu0 0.0
    %47 = vmatpush1.msra.mxu0 0.0
    %48 = vmatprep.subr.mxu0 0.0
    %49 = vmatpush1.msra.mxu0 %v18
    %50 = vmatprep.subr.mxu0 0.0
    %51 = vmatpush1.msra.mxu0 %v17
    %52 = vmatprep.subr.mxu0 0.0
    %53 = vmatpush1.msra.mxu0 %v16
    %54 = vmatprep.subr.mxu0 0.0
    %55 = vmatpush1.msra.mxu0 %v15
    %56 = vmatprep.subr.mxu0 0.0
    %57 = vmatpush1.msra.mxu0 %v14
    %58 = vmatprep.subr.mxu0 0.0
    %59 = vmatpush2.msra.mxu0 0.0
    %60 = vmatprep.subr.mxu0 0.0
    %61 = vmatpush2.msra.mxu0 0.0
    %62 = vmatprep.subr.mxu0 0.0
    %63 = vmatpush2.msra.mxu0 0.0
    %64 = vmatprep.subr.mxu0 0.0
    %65 = vmatpush2.msra.mxu0 0.0
    %66 = vmatprep.subr.mxu0 0.0
    %67 = vmatpush2.msra.mxu0 0.0
    %68 = vmatprep.subr.mxu0 0.0
    %69 = vmatpush2.msra.mxu0 0.0
    %70 = vmatprep.subr.mxu0 0.0
    %71 = vmatpush2.msra.mxu0 0.0
    %72 = vmatprep.subr.mxu0 0.0
    %73 = vmatpush2.msra.mxu0 0.0
    %74 = vmatprep.subr.mxu0 0.0
    %75 = vmatpush2.msra.mxu0 0.0
    %76 = vmatprep.subr.mxu0 0.0
    %77 = vmatpush2.msra.mxu0 0.0
    %78 = vmatprep.subr.mxu0 0.0
    %79 = vmatpush2.msra.mxu0 0.0
    %80 = vmatprep.subr.mxu0 0.0
    %81 = vmatpush2.msra.mxu0 0.0
    %82 = vmatprep.subr.mxu0 0.0
    %83 = vmatpush2.msra.mxu0 0.0
    %84 = vmatprep.subr.mxu0 0.0
    %85 = vmatpush2.msra.mxu0 0.0
    %86 = vmatprep.subr.mxu0 0.0
    %87 = vmatpush2.msra.mxu0 0.0
    %88 = vmatprep.subr.mxu0 0.0
    %89 = vmatpush2.msra.mxu0 0.0
    %90 = vmatprep.mubr.f32.mxu0 0.0
    %91 = vmatmul.mubr.f32.gmra.mxu0 %v21
    %v92 = vpop.f32.mrf.mxu0
    %v93 = vadd.f32 0.0, %v92
    %v94 = vpop.f32.mrf.mxu0
    %95 = vmatprep.mubr.f32.mxu0 0.0
    %96 = vmatmul.mubr.f32.gmra.mxu0 %v24
    %v97 = vpop.f32.mrf.mxu0
    %v98 = vadd.f32 0.0, %v97
    %v99 = vpop.f32.mrf.mxu0
    %100 = vdwg.mxu0
    %101 = vxpose.xlu0.b32.start [1/16] %v93, 128
    %102 = vxpose.xlu0.b32.cont [2/16] %v98, 128
    %103 = vxpose.xlu0.b32.cont [3/16] 0.0, 128
    %104 = vxpose.xlu0.b32.cont [4/16] 0.0, 128
    %105 = vxpose.xlu0.b32.cont [5/16] 0.0, 128
    %106 = vxpose.xlu0.b32.cont [6/16] 0.0, 128
    %107 = vxpose.xlu0.b32.cont [7/16] 0.0, 128
    %108 = vxpose.xlu0.b32.cont [8/16] 0.0, 128
    %109 = vxpose.xlu0.b32.cont [9/16] 0.0, 128
    %110 = vxpose.xlu0.b32.cont [10/16] 0.0, 128
    %111 = vxpose.xlu0.b32.cont [11/16] 0.0, 128
    %112 = vxpose.xlu0.b32.cont [12/16] 0.0, 128
    %113 = vxpose.xlu0.b32.cont [13/16] 0.0, 128
    %114 = vxpose.xlu0.b32.cont [14/16] 0.0, 128
    %115 = vxpose.xlu0.b32.cont [15/16] 0.0, 128
    %116 = vxpose.xlu0.b32.end [16/16] 0.0, 128
    %v117 = vpop.trf.xlu0
    %v118 = vpop.trf.xlu0
    %v119 = vpop.trf.xlu0
    %v120 = vpop.trf.xlu0
    %v121 = vpop.trf.xlu0
    %v122 = vpop.trf.xlu0
    %v123 = vpop.trf.xlu0
    %v124 = vpop.trf.xlu0
    %v125 = vpop.trf.xlu0
    %v126 = vpop.trf.xlu0
    %v127 = vpop.trf.xlu0
    %v128 = vpop.trf.xlu0
    %v129 = vpop.trf.xlu0
    %v130 = vpop.trf.xlu0
    %v131 = vpop.trf.xlu0
    %v132 = vpop.trf.xlu0
    %vm133 = vcmask 130048
    %134 = vst.msk [vmem:[#allocation2] sm:$0xff] %vm133, %v117
    // Predicated region
    $region10: #{tpu_custom_call.1} parent=1 // pred_check
      _
    $region11: #{tpu_custom_call.1} parent=1 // pred_check_branch
      %136 = sbr.rel (0) target = $region13
    $region12: #{tpu_custom_call.1} parent=1 // pred_region
      %s138 = ssub.s32 128, 128
      %139 = vsyncadd [#allocation3], %s138
      %s141 = sshll.u32 [#allocation2], 4
      %s142 = int_to_ptr.vmem [resolvable:$true] %s141
      %144 = dma.vmem_to_hbm [thread:$0]  %s142, 128, %s2, [#allocation3]
    $region13: #{tpu_custom_call.1} parent=1 // pred_fallthru
      _
    // Predicated region
    $region14: #{tpu_custom_call.1} parent=1 // pred_check
      _
    $region15: #{tpu_custom_call.1} parent=1 // pred_check_branch
      %146 = sbr.rel (0) target = $region17
    $region16: #{tpu_custom_call.1} parent=1 // pred_region
      %147 = dma.done [#allocation3], 128
    $region17: #{tpu_custom_call.1} parent=1 // pred_fallthru
      _
    %148 = vsyncpa [#allocation3], 1

</llo_original>
